<compile_context>
chip_gen: v7x
topology: tpu7x:2x2x1
jax: 0.10.0
libtpu: 0.0.40
codegen_flags: <defaults>
</compile_context>

<pallas_src>
import jax
import jax.numpy as jnp
from jax import lax
from jax.experimental import pallas as pl
from jax.experimental.pallas import tpu as pltpu

# ---- "config" of the original module (deterministic, in-script) ------------
SAMPLE_RATE = 16000
N_FFT = 64
HOP = 32
N_FILTER = 20
N_LFCC = 10
LOG_OFFSET = 1e-6                 # torchaudio LFCC log_lf offset

N_FREQS = N_FFT // 2 + 1          # 33 rFFT bins
SPEC_LANES = 128                  # fused [cos | sin] output lanes (one vreg width)
IM_OFF = 64                       # sin half starts at the vreg-half boundary
BB_MAX = 16                       # max batch elements per grid step
VMEM_BUDGET_BYTES = 12 * 1024 * 1024  # conservative per-step working-set budget


def _round_up(x, m):
    return (x + m - 1) // m * m


def _cdiv(a, b):
    return -(-a // b)


# ---------------- constant construction (plain JAX glue) --------------------
def _windowed_dft_halves():
    # Hann(periodic) window folded into the rFFT basis, cos|sin packed in one
    # (64, 128) matrix, then split into the top/bottom 32 sample rows so framing
    # becomes two accumulated K=32 matmuls (no lane concat in the kernel).
    n = jnp.arange(N_FFT, dtype=jnp.float32)
    w = 0.5 - 0.5 * jnp.cos(2.0 * jnp.pi * n / N_FFT)
    k = jnp.arange(N_FREQS, dtype=jnp.float32)
    ang = 2.0 * jnp.pi * n[:, None] * k[None, :] / N_FFT
    cos_w = w[:, None] * jnp.cos(ang)                     # (64, 33)
    sin_w = w[:, None] * jnp.sin(ang)                     # (64, 33)
    d = jnp.zeros((N_FFT, SPEC_LANES), jnp.float32)
    d = d.at[:, :N_FREQS].set(cos_w)
    d = d.at[:, IM_OFF:IM_OFF + N_FREQS].set(sin_w)
    return d[:HOP], d[HOP:]                               # (32, 128), (32, 128)


def _linear_fbanks_dup():
    # torchaudio.functional.linear_fbanks(f_min=0, f_max=sample_rate//2),
    # zero-padded to 64 rows and DUPLICATED to 128 rows so that
    # (spec*spec) @ fb128 == (re^2 + im^2) @ fb (dead spec lanes are exactly zero).
    all_freqs = jnp.linspace(0.0, float(SAMPLE_RATE // 2), N_FREQS)
    f_pts = jnp.linspace(0.0, float(SAMPLE_RATE // 2), N_FILTER + 2)
    f_diff = f_pts[1:] - f_pts[:-1]                       # (n_filter+1,)
    slopes = f_pts[None, :] - all_freqs[:, None]          # (n_freqs, n_filter+2)
    down = (-slopes[:, :-2]) / f_diff[:-1]
    up = slopes[:, 2:] / f_diff[1:]
    fb = jnp.maximum(0.0, jnp.minimum(down, up)).astype(jnp.float32)  # (33, 20)
    half = jnp.zeros((IM_OFF, N_FILTER), jnp.float32).at[:N_FREQS, :].set(fb)
    return jnp.concatenate([half, half], axis=0)          # (128, n_filter)


def _create_dct():
    # torchaudio.functional.create_dct(norm="ortho") -> (n_filter, n_lfcc)
    n = jnp.arange(N_FILTER, dtype=jnp.float32)
    k = jnp.arange(N_LFCC, dtype=jnp.float32)[:, None]
    dct = jnp.cos(jnp.pi / N_FILTER * (n + 0.5) * k)      # (n_lfcc, n_filter)
    dct = dct.at[0].multiply(1.0 / jnp.sqrt(2.0))
    dct = dct * jnp.sqrt(2.0 / N_FILTER)
    return dct.T.astype(jnp.float32)                      # (n_filter, n_lfcc)


# ------------------------------ Pallas kernel -------------------------------
def lfcc_loss_kernel(xs_ref,                # (2, bb, R, 32) stacked preds/targets rows
                     dtop_ref, dbot_ref,    # (32, 128) windowed [cos|sin] halves
                     fb_ref,                # (128, n_filter) duplicated fbanks
                     dct_ref,               # (n_filter, n_lfcc)
                     nv_ref,                # (bb, 1, 1) f32 valid-frame counts
                     out_ref):              # (1, 1, 128) f32 partial numerator
    bb = xs_ref.shape[1]
    t_pad = xs_ref.shape[2] - 1             # R = t_pad + 1 rows of 32 samples
    m = 2 * bb * t_pad                      # preds+targets frames this step

    # ---- in-kernel framing via split DFT (hop=32, n_fft=64):
    # frame t = rows[t] ++ rows[t+1]  =>  spec = rows[t]@D_top + rows[t+1]@D_bot
    top = xs_ref[:, :, pl.ds(0, t_pad), :].reshape(m, HOP)   # (M, 32)
    bot = xs_ref[:, :, pl.ds(1, t_pad), :].reshape(m, HOP)   # (M, 32)

    spec = (jnp.dot(top, dtop_ref[...], preferred_element_type=jnp.float32)
            + jnp.dot(bot, dbot_ref[...], preferred_element_type=jnp.float32))  # (M,128)

    # ---- power spectrum without re/im split: square whole vreg, contract against
    # duplicated filterbank (dead lanes are zero -> exact).
    power = spec * spec                                                    # (M, 128)
    lin = jnp.dot(power, fb_ref[...], preferred_element_type=jnp.float32)  # (M, 20)

    # ---- log (log_lf=True) -> DCT
    lfcc = jnp.dot(jnp.log(lin + LOG_OFFSET), dct_ref[...],
                   preferred_element_type=jnp.float32)                     # (M, 10)

    # ---- masked L1 partial sum (slab 0 = preds, slab 1 = targets)
    lf = lfcc.reshape(2, bb, t_pad, N_LFCC)
    diff = jnp.abs(lf[0] - lf[1])                                          # (bb, Tp, 10)

    t_iota = lax.broadcasted_iota(jnp.int32, (bb, t_pad, 1), 1).astype(jnp.float32)
    mask = (t_iota < nv_ref[...]).astype(jnp.float32)                      # (bb, Tp, 1)
    num = jnp.sum(diff * mask)

    out_ref[...] = jnp.full((1, 1, SPEC_LANES), num, dtype=jnp.float32)


# ------------------------------ wrapper --------------------------------------
def _pick_bb(batch, t_pad):
    """Batch elements per grid step: big blocks, but VMEM-safe and >=2 grid steps."""
    bb = BB_MAX

    def step_bytes(b):
        m = 2 * b * t_pad
        inter = m * (2 * SPEC_LANES + 2 * HOP) * 4          # spec + power + top/bot
        inputs = 2 * (2 * b * (t_pad + 1) * HOP * 4)        # xs block, double-buffered
        return inter + inputs

    while bb > 1 and step_bytes(bb) > VMEM_BUDGET_BYTES:
        bb //= 2
    # v7x has 2 TensorCores: make sure the "parallel" axis has >= 2 steps when B >= 2.
    while bb > 1 and _cdiv(batch, bb) < 2:
        bb //= 2
    return bb


def lfcc_loss(preds, targets, lengths):
    B, L = preds.shape
    assert L >= N_FFT, "waveform shorter than n_fft"
    T = 1 + (L - N_FFT) // HOP              # true frame count (center=False)
    t_pad = _round_up(T, 8)                 # sublane-aligned frame count
    R = t_pad + 1                           # 32-sample rows needed per element
    l_pad = R * HOP
    bb = _pick_bb(B, t_pad)
    b_pad = _round_up(B, bb)
    G = b_pad // bb

    def prep(x):
        x = jnp.pad(x.astype(jnp.float32), ((0, b_pad - B), (0, l_pad - L)))
        return x.reshape(b_pad, R, HOP)     # free re-view; framing happens in-kernel

    # Stack preds/targets once in HBM -> no axis-0 concat inside the kernel.
    xs = jnp.stack([prep(preds), prep(targets)], axis=0)   # (2, b_pad, R, 32)

    dtop, dbot = _windowed_dft_halves()     # (32, 128) x2
    fb128 = _linear_fbanks_dup()            # (128, n_filter)
    dct = _create_dct()                     # (n_filter, n_lfcc)

    lengths = lengths.astype(jnp.int32)
    # valid frames per element; clamped to [0, T] (torch slice semantics for
    # 0 <= length; negative-length slicing is not meaningful here).
    nvalid = jnp.clip(1 + (lengths - N_FFT) // HOP, 0, T)
    denom = jnp.sum(nvalid).astype(jnp.float32) * float(N_LFCC)   # == sum(mask)
    denom = jnp.maximum(denom, 1.0)                               # guard all-empty
    nv = jnp.pad(nvalid.astype(jnp.float32), (0, b_pad - B)).reshape(b_pad, 1, 1)

    partial = pl.pallas_call(
        lfcc_loss_kernel,
        out_shape=jax.ShapeDtypeStruct((G, 1, SPEC_LANES), jnp.float32),
        grid=(G,),
        in_specs=[
            pl.BlockSpec((2, bb, R, HOP), lambda g: (0, g, 0, 0)),
            pl.BlockSpec((HOP, SPEC_LANES), lambda g: (0, 0)),
            pl.BlockSpec((HOP, SPEC_LANES), lambda g: (0, 0)),
            pl.BlockSpec((SPEC_LANES, N_FILTER), lambda g: (0, 0)),
            pl.BlockSpec((N_FILTER, N_LFCC), lambda g: (0, 0)),
            pl.BlockSpec((bb, 1, 1), lambda g: (g, 0, 0)),
        ],
        out_specs=pl.BlockSpec((1, 1, SPEC_LANES), lambda g: (g, 0, 0)),
        compiler_params=pltpu.CompilerParams(
            dimension_semantics=("parallel",),
            vmem_limit_bytes=32 * 1024 * 1024),
    )(xs, dtop, dbot, fb128, dct, nv)

    return jnp.sum(partial[:, 0, 0]) / denom


# ------------------------------ demo -----------------------------------------
if __name__ == "__main__":
    key = jax.random.PRNGKey(0)
    k1, k2 = jax.random.split(key)
    B, L = 2, 512
    preds = jax.random.normal(k1, (B, L), dtype=jnp.float32)
    targets = jax.random.normal(k2, (B, L), dtype=jnp.float32)
    lengths = jnp.array([512, 320], dtype=jnp.int32)

    loss = lfcc_loss(preds, targets, lengths)
    jax.block_until_ready(loss)
    assert loss.shape == () and bool(jnp.isfinite(loss))
    print("KERNEL_OK")
</pallas_src>

<mosaic_0001>
module attributes {stable_mosaic.version = 11 : i64} {
  func.func @lfcc_loss_kernel(%arg0: i32, %arg1: memref<2x1x17x32xf32, #tpu.memory_space<vmem>>, %arg2: memref<32x128xf32, #tpu.memory_space<vmem>>, %arg3: memref<32x128xf32, #tpu.memory_space<vmem>>, %arg4: memref<128x20xf32, #tpu.memory_space<vmem>>, %arg5: memref<20x10xf32, #tpu.memory_space<vmem>>, %arg6: memref<1x1x1xf32, #tpu.memory_space<vmem>>, %arg7: memref<1x1x128xf32, #tpu.memory_space<vmem>>) attributes {dimension_semantics = [#tpu.dimension_semantics<parallel>], iteration_bounds = array<i64: 2>, scalar_prefetch = 0 : i64, scratch_operands = 0 : i64, tpu.core_type = #tpu.core_type<tc>, window_params = [{transform_indices = @transform_0, window_bounds = array<i64: 2, 1, 17, 32>}, {pipeline_mode = #tpu.pipeline_mode<synchronous>, transform_indices = @transform_1, window_bounds = array<i64: 32, 128>}, {pipeline_mode = #tpu.pipeline_mode<synchronous>, transform_indices = @transform_2, window_bounds = array<i64: 32, 128>}, {pipeline_mode = #tpu.pipeline_mode<synchronous>, transform_indices = @transform_3, window_bounds = array<i64: 128, 20>}, {pipeline_mode = #tpu.pipeline_mode<synchronous>, transform_indices = @transform_4, window_bounds = array<i64: 20, 10>}, {transform_indices = @transform_5, window_bounds = array<i64: 1, 1, 1>}, {transform_indices = @transform_6, window_bounds = array<i64: 1, 1, 128>}]} {
    %c0 = arith.constant 0 : index
    %c0_0 = arith.constant 0 : index
    %c0_1 = arith.constant 0 : index
    %c0_2 = arith.constant 0 : index
    %0 = vector.load %arg1[%c0, %c0_0, %c0_1, %c0_2] : memref<2x1x17x32xf32, #tpu.memory_space<vmem>>, vector<2x1x16x32xf32>
    %1 = vector.shape_cast %0 : vector<2x1x16x32xf32> to vector<32x32xf32>
    %c0_3 = arith.constant 0 : index
    %c0_4 = arith.constant 0 : index
    %c1 = arith.constant 1 : index
    %c0_5 = arith.constant 0 : index
    %2 = vector.load %arg1[%c0_3, %c0_4, %c1, %c0_5] : memref<2x1x17x32xf32, #tpu.memory_space<vmem>>, vector<2x1x16x32xf32>
    %3 = vector.shape_cast %2 : vector<2x1x16x32xf32> to vector<32x32xf32>
    %c0_6 = arith.constant 0 : index
    %c0_7 = arith.constant 0 : index
    %4 = vector.load %arg2[%c0_6, %c0_7] : memref<32x128xf32, #tpu.memory_space<vmem>>, vector<32x128xf32>
    %cst = arith.constant dense<0.000000e+00> : vector<32x128xf32>
    %5 = tpu.matmul %1, %4, %cst {dimension_numbers = #tpu.dot_dimension_numbers<[1], [0], [0], [1], [0, 0, 1, 1], [], []>} : vector<32x32xf32>, vector<32x128xf32>, vector<32x128xf32> -> vector<32x128xf32>
    %c0_8 = arith.constant 0 : index
    %c0_9 = arith.constant 0 : index
    %6 = vector.load %arg3[%c0_8, %c0_9] : memref<32x128xf32, #tpu.memory_space<vmem>>, vector<32x128xf32>
    %cst_10 = arith.constant dense<0.000000e+00> : vector<32x128xf32>
    %7 = tpu.matmul %3, %6, %cst_10 {dimension_numbers = #tpu.dot_dimension_numbers<[1], [0], [0], [1], [0, 0, 1, 1], [], []>} : vector<32x32xf32>, vector<32x128xf32>, vector<32x128xf32> -> vector<32x128xf32>
    %8 = arith.addf %5, %7 : vector<32x128xf32>
    %9 = arith.mulf %8, %8 : vector<32x128xf32>
    %c0_11 = arith.constant 0 : index
    %c0_12 = arith.constant 0 : index
    %10 = vector.load %arg4[%c0_11, %c0_12] : memref<128x20xf32, #tpu.memory_space<vmem>>, vector<128x20xf32>
    %cst_13 = arith.constant dense<0.000000e+00> : vector<32x20xf32>
    %11 = tpu.matmul %9, %10, %cst_13 {dimension_numbers = #tpu.dot_dimension_numbers<[1], [0], [0], [1], [0, 0, 1, 1], [], []>} : vector<32x128xf32>, vector<128x20xf32>, vector<32x20xf32> -> vector<32x20xf32>
    %cst_14 = arith.constant 9.99999997E-7 : f32
    %12 = vector.broadcast %cst_14 : f32 to vector<32x20xf32>
    %13 = arith.addf %11, %12 : vector<32x20xf32>
    %14 = math.log %13 : vector<32x20xf32>
    %c0_15 = arith.constant 0 : index
    %c0_16 = arith.constant 0 : index
    %15 = vector.load %arg5[%c0_15, %c0_16] : memref<20x10xf32, #tpu.memory_space<vmem>>, vector<20x10xf32>
    %cst_17 = arith.constant dense<0.000000e+00> : vector<32x10xf32>
    %16 = tpu.matmul %14, %15, %cst_17 {dimension_numbers = #tpu.dot_dimension_numbers<[1], [0], [0], [1], [0, 0, 1, 1], [], []>} : vector<32x20xf32>, vector<20x10xf32>, vector<32x10xf32> -> vector<32x10xf32>
    %17 = vector.shape_cast %16 : vector<32x10xf32> to vector<2x1x16x10xf32>
    %18 = vector.extract_strided_slice %17 {offsets = [0, 0, 0, 0], sizes = [1, 1, 16, 10], strides = [1, 1, 1, 1]} : vector<2x1x16x10xf32> to vector<1x1x16x10xf32>
    %19 = vector.shape_cast %18 : vector<1x1x16x10xf32> to vector<1x16x10xf32>
    %20 = vector.extract_strided_slice %17 {offsets = [1, 0, 0, 0], sizes = [1, 1, 16, 10], strides = [1, 1, 1, 1]} : vector<2x1x16x10xf32> to vector<1x1x16x10xf32>
    %21 = vector.shape_cast %20 : vector<1x1x16x10xf32> to vector<1x16x10xf32>
    %22 = arith.subf %19, %21 : vector<1x16x10xf32>
    %23 = math.absf %22 : vector<1x16x10xf32>
    %24 = tpu.iota {dimensions = array<i32: 1>} : vector<1x16x1xi32>
    %25 = arith.sitofp %24 : vector<1x16x1xi32> to vector<1x16x1xf32>
    %c0_18 = arith.constant 0 : index
    %c0_19 = arith.constant 0 : index
    %c0_20 = arith.constant 0 : index
    %26 = vector.load %arg6[%c0_18, %c0_19, %c0_20] : memref<1x1x1xf32, #tpu.memory_space<vmem>>, vector<1x1x1xf32>
    %27 = vector.broadcast %26 : vector<1x1x1xf32> to vector<1x16x1xf32>
    %28 = arith.cmpf olt, %25, %27 : vector<1x16x1xf32>
    %29 = arith.extui %28 : vector<1x16x1xi1> to vector<1x16x1xi32>
    %30 = arith.sitofp %29 : vector<1x16x1xi32> to vector<1x16x1xf32>
    %31 = vector.broadcast %30 : vector<1x16x1xf32> to vector<1x16x10xf32>
    %32 = arith.mulf %23, %31 : vector<1x16x10xf32>
    %33 = vector.shape_cast %32 : vector<1x16x10xf32> to vector<1x1x16x10xf32>
    %cst_21 = arith.constant dense<0.000000e+00> : vector<1xf32>
    %34 = vector.multi_reduction <add>, %33, %cst_21 [1, 2, 3] : vector<1x1x16x10xf32> to vector<1xf32>
    %35 = vector.shape_cast %34 : vector<1xf32> to vector<1x1x1x1xf32>
    %36 = vector.extract %35[0, 0, 0, 0] : f32 from vector<1x1x1x1xf32>
    %37 = vector.broadcast %36 : f32 to vector<1x1x128xf32>
    %c0_22 = arith.constant 0 : index
    %c0_23 = arith.constant 0 : index
    %c0_24 = arith.constant 0 : index
    %38 = vector.load %arg7[%c0_22, %c0_23, %c0_24] : memref<1x1x128xf32, #tpu.memory_space<vmem>>, vector<1x1x128xf32>
    tpu.vector_store %arg7[%c0_22, %c0_23, %c0_24], %37 {strides = array<i32>} : memref<1x1x128xf32, #tpu.memory_space<vmem>>, vector<1x1x128xf32>,
    return
  }
  func.func @transform_0(%arg0: i32) -> (i32, i32, i32, i32) {
    %c0_i32 = arith.constant 0 : i32
    %c0_i32_0 = arith.constant 0 : i32
    %c0_i32_1 = arith.constant 0 : i32
    %c0_i32_2 = arith.constant 0 : i32
    return %c0_i32, %arg0, %c0_i32_0, %c0_i32_1 : i32, i32, i32, i32
  }
  func.func @transform_1(%arg0: i32) -> (i32, i32) {
    %c0_i32 = arith.constant 0 : i32
    %c0_i32_0 = arith.constant 0 : i32
    %c0_i32_1 = arith.constant 0 : i32
    return %c0_i32, %c0_i32_0 : i32, i32
  }
  func.func @transform_2(%arg0: i32) -> (i32, i32) {
    %c0_i32 = arith.constant 0 : i32
    %c0_i32_0 = arith.constant 0 : i32
    %c0_i32_1 = arith.constant 0 : i32
    return %c0_i32, %c0_i32_0 : i32, i32
  }
  func.func @transform_3(%arg0: i32) -> (i32, i32) {
    %c0_i32 = arith.constant 0 : i32
    %c0_i32_0 = arith.constant 0 : i32
    %c0_i32_1 = arith.constant 0 : i32
    return %c0_i32, %c0_i32_0 : i32, i32
  }
  func.func @transform_4(%arg0: i32) -> (i32, i32) {
    %c0_i32 = arith.constant 0 : i32
    %c0_i32_0 = arith.constant 0 : i32
    %c0_i32_1 = arith.constant 0 : i32
    return %c0_i32, %c0_i32_0 : i32, i32
  }
  func.func @transform_5(%arg0: i32) -> (i32, i32, i32) {
    %c0_i32 = arith.constant 0 : i32
    %c0_i32_0 = arith.constant 0 : i32
    %c0_i32_1 = arith.constant 0 : i32
    return %arg0, %c0_i32, %c0_i32_0 : i32, i32, i32
  }
  func.func @transform_6(%arg0: i32) -> (i32, i32, i32) {
    %c0_i32 = arith.constant 0 : i32
    %c0_i32_0 = arith.constant 0 : i32
    %c0_i32_1 = arith.constant 0 : i32
    return %arg0, %c0_i32, %c0_i32_0 : i32, i32, i32
  }
}

</mosaic_0001>

<llo_original>
// kernel: tpu_custom_call.1
$region0: #{tpu_custom_call.1}
  #allocation0 [shape = 'u32[]', space=smem, size = 0x4, offset = 0x4, fixed_abs, tag = 'smem constant byte address 0x4 - core index']
  #allocation1 [shape = 'u32[144,128]{1,0:T(1,128)}', space=vmem, size = 0x12000, scoped, tag = 'internal scratch']
  %s0 = inlined_call_operand.vmem [shape: f32[2,2,17,32], index: 0, kind: input, shape index: {}]
  %s1 = inlined_call_operand.vmem [shape: f32[32,128], index: 1, kind: input, shape index: {}]
  %s2 = inlined_call_operand.vmem [shape: f32[32,128], index: 2, kind: input, shape index: {}]
  %s3 = inlined_call_operand.vmem [shape: f32[128,20], index: 3, kind: input, shape index: {}]
  %s4 = inlined_call_operand.vmem [shape: f32[20,10], index: 4, kind: input, shape index: {}]
  %s5 = inlined_call_operand.vmem [shape: f32[2,1,1], index: 5, kind: input, shape index: {}]
  %s6 = inlined_call_operand.hbm [shape: f32[2,1,128], index: 6, kind: output, shape index: {}]
  %s7 = sld [smem:[#allocation0]]
  $region95: #{tpu_custom_call.1} parent=0
    _
  %s9 = ssub.s32 1, %s7
  %s10 = scalar_select 0, %s9, %s7
  $region1: #{tpu_custom_call.1} parent=0
    #allocation2 [shape = 'u8[49152]{0}', space=vmem, size = 0xc000, scoped, tag = 'input window, operand 0']
    #allocation3 [shape = 'u8[1024]{0}', space=vmem, size = 0x400, scoped, tag = 'output window, operand 0']
    #allocation4 [shape = 's32[2]{0}', space=sflag, size = 0x8, scoped, tag = 'scoped memory for tpu_custom_call.1']
    %11 = vsyncpa [#allocation4], 0
    %s12 = scalar_lea.sflag [#allocation4], 1
    %13 = vsyncpa %s12, 0
    loop: start=0, step=1, limit=4
    $region2: #{tpu_custom_call.1} parent=1 // loop_pre_header
      _
    $region3: #{tpu_custom_call.1} parent=1 // loop_header
      %s15 = sphi 0, %s19
      %p16 = scmp.ge.s32.totalorder %s15, 4
      %s25 = sphi 0, %s27
      %s28 = sphi 0, %s25
      %s29 = sphi 0, %s28
      %s45 = sphi 0, %s29
      %s49 = sphi 0, %s49
      %s51 = sphi 0, %s49
      %s52 = sphi 0, %s51
      %s66 = sphi 0, %s52
      %s70 = sphi 0, %s70
      %s72 = sphi 0, %s70
      %s73 = sphi 0, %s72
      %s87 = sphi 0, %s73
      %s91 = sphi 0, %s91
      %s93 = sphi 0, %s91
      %s94 = sphi 0, %s93
      %s108 = sphi 0, %s94
      %s112 = sphi 0, %s112
      %s114 = sphi 0, %s112
      %s115 = sphi 0, %s114
      %s129 = sphi 0, %s115
      %s135 = sphi 0, %s137
      %s138 = sphi 0, %s135
      %s139 = sphi 0, %s138
      %s155 = sphi 0, %s139
      %s161 = sphi 0, %s163
      %s164 = sphi 0, %s161
      %s165 = sphi 0, %s164
      %s181 = sphi 0, %s165
    $region4: #{tpu_custom_call.1} parent=1 // loop_header_branch
      %18 = sbr.rel (%p16) target = $region8
    $region5: #{tpu_custom_call.1} parent=1 // loop_body
      %s20 = ssub.s32 %s15, 1
      %s21 = ssub.s32 %s15, 2
      %s22 = sadd.s32 %s15, 1
      %s23 = ssub.s32 %s15, %s22
      %p24 = scmp.eq.s32.totalorder %s23, 0
      %s26 = sadd.s32 %s25, 1
      %s27 = scalar_select %p24, %s25, %s26
      %p30 = pneg %p24
      %p31 = scmp.eq.s32.totalorder %s15, 1
      %p32 = por %p30, %p31
      %p33 = scmp.ne.s32.totalorder %s25, %s28
      %p34 = scmp.eq.s32.totalorder %s15, 0
      %p35 = por %p33, %p34
      %p36 = scmp.ne.s32.totalorder %s25, %s28
      %p37 = scmp.eq.s32.totalorder %s20, 1
      %p38 = por %p36, %p37
      %p39 = scmp.ne.s32.totalorder %s28, %s29
      %p40 = scmp.eq.s32.totalorder %s20, 0
      %p41 = por %p39, %p40
      %p42 = scmp.ne.s32.totalorder %s28, %s29
      %p43 = scmp.eq.s32.totalorder %s21, 1
      %p44 = por %p42, %p43
      %p46 = scmp.ne.s32.totalorder %s29, %s45
      %p47 = scmp.eq.s32.totalorder %s21, 0
      %p48 = por %p46, %p47
      %s50 = sadd.s32 %s49, 1
      %p53 = scmp.eq.s32.totalorder %s15, 1
      %p54 = scmp.ne.s32.totalorder %s49, %s51
      %p55 = scmp.eq.s32.totalorder %s15, 0
      %p56 = por %p54, %p55
      %p57 = scmp.ne.s32.totalorder %s49, %s51
      %p58 = scmp.eq.s32.totalorder %s20, 1
      %p59 = por %p57, %p58
      %p60 = scmp.ne.s32.totalorder %s51, %s52
      %p61 = scmp.eq.s32.totalorder %s20, 0
      %p62 = por %p60, %p61
      %p63 = scmp.ne.s32.totalorder %s51, %s52
      %p64 = scmp.eq.s32.totalorder %s21, 1
      %p65 = por %p63, %p64
      %p67 = scmp.ne.s32.totalorder %s52, %s66
      %p68 = scmp.eq.s32.totalorder %s21, 0
      %p69 = por %p67, %p68
      %s71 = sadd.s32 %s70, 1
      %p74 = scmp.eq.s32.totalorder %s15, 1
      %p75 = scmp.ne.s32.totalorder %s70, %s72
      %p76 = scmp.eq.s32.totalorder %s15, 0
      %p77 = por %p75, %p76
      %p78 = scmp.ne.s32.totalorder %s70, %s72
      %p79 = scmp.eq.s32.totalorder %s20, 1
      %p80 = por %p78, %p79
      %p81 = scmp.ne.s32.totalorder %s72, %s73
      %p82 = scmp.eq.s32.totalorder %s20, 0
      %p83 = por %p81, %p82
      %p84 = scmp.ne.s32.totalorder %s72, %s73
      %p85 = scmp.eq.s32.totalorder %s21, 1
      %p86 = por %p84, %p85
      %p88 = scmp.ne.s32.totalorder %s73, %s87
      %p89 = scmp.eq.s32.totalorder %s21, 0
      %p90 = por %p88, %p89
      %s92 = sadd.s32 %s91, 1
      %p95 = scmp.eq.s32.totalorder %s15, 1
      %p96 = scmp.ne.s32.totalorder %s91, %s93
      %p97 = scmp.eq.s32.totalorder %s15, 0
      %p98 = por %p96, %p97
      %p99 = scmp.ne.s32.totalorder %s91, %s93
      %p100 = scmp.eq.s32.totalorder %s20, 1
      %p101 = por %p99, %p100
      %p102 = scmp.ne.s32.totalorder %s93, %s94
      %p103 = scmp.eq.s32.totalorder %s20, 0
      %p104 = por %p102, %p103
      %p105 = scmp.ne.s32.totalorder %s93, %s94
      %p106 = scmp.eq.s32.totalorder %s21, 1
      %p107 = por %p105, %p106
      %p109 = scmp.ne.s32.totalorder %s94, %s108
      %p110 = scmp.eq.s32.totalorder %s21, 0
      %p111 = por %p109, %p110
      %s113 = sadd.s32 %s112, 1
      %p116 = scmp.eq.s32.totalorder %s15, 1
      %p117 = scmp.ne.s32.totalorder %s112, %s114
      %p118 = scmp.eq.s32.totalorder %s15, 0
      %p119 = por %p117, %p118
      %p120 = scmp.ne.s32.totalorder %s112, %s114
      %p121 = scmp.eq.s32.totalorder %s20, 1
      %p122 = por %p120, %p121
      %p123 = scmp.ne.s32.totalorder %s114, %s115
      %p124 = scmp.eq.s32.totalorder %s20, 0
      %p125 = por %p123, %p124
      %p126 = scmp.ne.s32.totalorder %s114, %s115
      %p127 = scmp.eq.s32.totalorder %s21, 1
      %p128 = por %p126, %p127
      %p130 = scmp.ne.s32.totalorder %s115, %s129
      %p131 = scmp.eq.s32.totalorder %s21, 0
      %p132 = por %p130, %p131
      %s133 = ssub.s32 %s15, %s22
      %p134 = scmp.eq.s32.totalorder %s133, 0
      %s136 = sadd.s32 %s135, 1
      %s137 = scalar_select %p134, %s135, %s136
      %p140 = pneg %p134
      %p141 = scmp.eq.s32.totalorder %s15, 1
      %p142 = por %p140, %p141
      %p143 = scmp.ne.s32.totalorder %s135, %s138
      %p144 = scmp.eq.s32.totalorder %s15, 0
      %p145 = por %p143, %p144
      %p146 = scmp.ne.s32.totalorder %s135, %s138
      %p147 = scmp.eq.s32.totalorder %s20, 1
      %p148 = por %p146, %p147
      %p149 = scmp.ne.s32.totalorder %s138, %s139
      %p150 = scmp.eq.s32.totalorder %s20, 0
      %p151 = por %p149, %p150
      %p152 = scmp.ne.s32.totalorder %s138, %s139
      %p153 = scmp.eq.s32.totalorder %s21, 1
      %p154 = por %p152, %p153
      %p156 = scmp.ne.s32.totalorder %s139, %s155
      %p157 = scmp.eq.s32.totalorder %s21, 0
      %p158 = por %p156, %p157
      %s159 = ssub.s32 %s15, %s22
      %p160 = scmp.eq.s32.totalorder %s159, 0
      %s162 = sadd.s32 %s161, 1
      %s163 = scalar_select %p160, %s161, %s162
      %p166 = pneg %p160
      %p167 = scmp.eq.s32.totalorder %s15, 1
      %p168 = por %p166, %p167
      %p169 = scmp.ne.s32.totalorder %s161, %s164
      %p170 = scmp.eq.s32.totalorder %s15, 0
      %p171 = por %p169, %p170
      %p172 = scmp.ne.s32.totalorder %s161, %s164
      %p173 = scmp.eq.s32.totalorder %s20, 1
      %p174 = por %p172, %p173
      %p175 = scmp.ne.s32.totalorder %s164, %s165
      %p176 = scmp.eq.s32.totalorder %s20, 0
      %p177 = por %p175, %p176
      %p178 = scmp.ne.s32.totalorder %s164, %s165
      %p179 = scmp.eq.s32.totalorder %s21, 1
      %p180 = por %p178, %p179
      %p182 = scmp.ne.s32.totalorder %s165, %s181
      %p183 = scmp.eq.s32.totalorder %s21, 0
      %p184 = por %p182, %p183
      %p185 = scmp.le.s32.totalorder 1, %s15
      %p186 = scmp.lt.s32.totalorder %s15, 3
      %p187 = pnand %p185, %p186
      %p188 = pneg %p187
      // Predicated region
      $region9: #{tpu_custom_call.1} parent=5 // pred_check
        _
      $region10: #{tpu_custom_call.1} parent=5 // pred_check_branch
        %190 = sbr.rel (%p187) target = $region12
      $region11: #{tpu_custom_call.1} parent=5 // pred_region
        %s191 = ssub.s32 %s15, 1
        // Predicated region
        $region13: #{tpu_custom_call.1} parent=11 // pred_check
          %p192 = pneg %p62
        $region14: #{tpu_custom_call.1} parent=11 // pred_check_branch
          %194 = sbr.rel (%p192) target = $region16
        $region15: #{tpu_custom_call.1} parent=11 // pred_region
          _
        $region16: #{tpu_custom_call.1} parent=11 // pred_fallthru
          _
        // Predicated region
        $region17: #{tpu_custom_call.1} parent=11 // pred_check
          %p195 = pneg %p83
        $region18: #{tpu_custom_call.1} parent=11 // pred_check_branch
          %197 = sbr.rel (%p195) target = $region20
        $region19: #{tpu_custom_call.1} parent=11 // pred_region
          _
        $region20: #{tpu_custom_call.1} parent=11 // pred_fallthru
          _
        // Predicated region
        $region21: #{tpu_custom_call.1} parent=11 // pred_check
          %p198 = pneg %p104
        $region22: #{tpu_custom_call.1} parent=11 // pred_check_branch
          %200 = sbr.rel (%p198) target = $region24
        $region23: #{tpu_custom_call.1} parent=11 // pred_region
          _
        $region24: #{tpu_custom_call.1} parent=11 // pred_fallthru
          _
        // Predicated region
        $region25: #{tpu_custom_call.1} parent=11 // pred_check
          %p201 = pneg %p125
        $region26: #{tpu_custom_call.1} parent=11 // pred_check_branch
          %203 = sbr.rel (%p201) target = $region28
        $region27: #{tpu_custom_call.1} parent=11 // pred_region
          _
        $region28: #{tpu_custom_call.1} parent=11 // pred_fallthru
          _
      $region12: #{tpu_custom_call.1} parent=5 // pred_fallthru
        _
      %p204 = scmp.lt.s32.totalorder %s15, 2
      // Predicated region
      $region29: #{tpu_custom_call.1} parent=5 // pred_check
        %p205 = pneg %p204
      $region30: #{tpu_custom_call.1} parent=5 // pred_check_branch
        %207 = sbr.rel (%p205) target = $region32
      $region31: #{tpu_custom_call.1} parent=5 // pred_region
        // Predicated region
        $region33: #{tpu_custom_call.1} parent=31 // pred_check
          %p208 = pneg %p35
        $region34: #{tpu_custom_call.1} parent=31 // pred_check_branch
          %210 = sbr.rel (%p208) target = $region36
        $region35: #{tpu_custom_call.1} parent=31 // pred_region
          %s211 = sand.u32 %s25, 1
          %s212 = sand.u32 %s25, 1
          %s213 = smul.addr %s212, 48
          %s214 = scalar_lea.vmem [#allocation2], %s213
          %s215 = smul.addr %s15, 3
          %s216 = smul.addr %s215, 8
          %s217 = scalar_lea.vmem %s0, %s216
          // Predicated region
          $region37: #{tpu_custom_call.1} parent=35 // pred_check
            _
          $region38: #{tpu_custom_call.1} parent=35 // pred_check_branch
            %219 = sbr.rel (0) target = $region40
          $region39: #{tpu_custom_call.1} parent=35 // pred_region
            // Predicated region
            $region41: #{tpu_custom_call.1} parent=39 // pred_check
              _
            $region42: #{tpu_custom_call.1} parent=39 // pred_check_branch
              %221 = sbr.rel (0) target = $region44
            $region43: #{tpu_custom_call.1} parent=39 // pred_region
              // Predicated region
              $region56: #{tpu_custom_call.1} parent=43 // pred_check
                _
              $region57: #{tpu_custom_call.1} parent=43 // pred_check_branch
                %246 = sbr.rel (0) target = $region59
              $region58: #{tpu_custom_call.1} parent=43 // pred_region
                loop: start=0, step=1, limit=1
                $region60: #{tpu_custom_call.1} parent=58 // loop_pre_header
                  _
                $region61: #{tpu_custom_call.1} parent=58 // loop_header
                  %s248 = sphi 0, %s252
                  %p249 = scmp.ge.s32.totalorder %s248, 1
                  %s253 = sphi %s217, %s217
                  %s254 = sphi %s214, %s214
                $region62: #{tpu_custom_call.1} parent=58 // loop_header_branch
                  %251 = sbr.rel (%p249) target = $region66
                $region63: #{tpu_custom_call.1} parent=58 // loop_body
                  %v255 = vld [vmem:[%s253] sm:$0xff]
                  %256 = vst [vmem:[%s254] sm:$0xff] %v255
                  %v257 = vld [vmem:[%s253 + $0x8] sm:$0xff]
                  %258 = vst [vmem:[%s254 + $0x8] sm:$0xff] %v257
                  %v259 = vld [vmem:[%s253 + $0x10] sm:$0xff]
                  %260 = vst [vmem:[%s254 + $0x10] sm:$0xff] %v259
                  %v261 = vld [vmem:[%s253 + $0x30] sm:$0xff]
                  %262 = vst [vmem:[%s254 + $0x18] sm:$0xff] %v261
                  %v263 = vld [vmem:[%s253 + $0x38] sm:$0xff]
                  %264 = vst [vmem:[%s254 + $0x20] sm:$0xff] %v263
                  %v265 = vld [vmem:[%s253 + $0x40] sm:$0xff]
                  %266 = vst [vmem:[%s254 + $0x28] sm:$0xff] %v265
                $region64: #{tpu_custom_call.1} parent=58 // loop_footer
                  %s252 = sadd.s32 1, %s248
                $region65: #{tpu_custom_call.1} parent=58 // loop_footer_branch
                  %247 = sbr.rel target = $region61
                $region66: #{tpu_custom_call.1} parent=58 // loop_exit
                  _
              $region59: #{tpu_custom_call.1} parent=43 // pred_fallthru
                _
              // Predicated region
              $region67: #{tpu_custom_call.1} parent=43 // pred_check
                _
              $region68: #{tpu_custom_call.1} parent=43 // pred_check_branch
                %268 = sbr.rel target = $region70
              $region69: #{tpu_custom_call.1} parent=43 // pred_region
                _
              $region70: #{tpu_custom_call.1} parent=43 // pred_fallthru
                _
            $region44: #{tpu_custom_call.1} parent=39 // pred_fallthru
              _
            // Predicated region
            $region45: #{tpu_custom_call.1} parent=39 // pred_check
              _
            $region46: #{tpu_custom_call.1} parent=39 // pred_check_branch
              %223 = sbr.rel target = $region48
            $region47: #{tpu_custom_call.1} parent=39 // pred_region
              loop: start=0, step=1, limit=1
              $region49: #{tpu_custom_call.1} parent=47 // loop_pre_header
                _
              $region50: #{tpu_custom_call.1} parent=47 // loop_header
                %s226 = sphi 0, %s230
                %p227 = scmp.ge.s32.totalorder %s226, 1
                %s231 = sphi %s217, %s217
                %s232 = sphi %s214, %s214
              $region51: #{tpu_custom_call.1} parent=47 // loop_header_branch
                %229 = sbr.rel (%p227) target = $region55
              $region52: #{tpu_custom_call.1} parent=47 // loop_body
                %v233 = vld [vmem:[%s231] sm:$0xff]
                %234 = vst [vmem:[%s232] sm:$0xff] %v233
                %v235 = vld [vmem:[%s231 + $0x8] sm:$0xff]
                %236 = vst [vmem:[%s232 + $0x8] sm:$0xff] %v235
                %v237 = vld [vmem:[%s231 + $0x10] sm:$0xff]
                %238 = vst [vmem:[%s232 + $0x10] sm:$0xff] %v237
                %v239 = vld [vmem:[%s231 + $0x30] sm:$0xff]
                %240 = vst [vmem:[%s232 + $0x18] sm:$0xff] %v239
                %v241 = vld [vmem:[%s231 + $0x38] sm:$0xff]
                %242 = vst [vmem:[%s232 + $0x20] sm:$0xff] %v241
                %v243 = vld [vmem:[%s231 + $0x40] sm:$0xff]
                %244 = vst [vmem:[%s232 + $0x28] sm:$0xff] %v243
              $region53: #{tpu_custom_call.1} parent=47 // loop_footer
                %s230 = sadd.s32 1, %s226
              $region54: #{tpu_custom_call.1} parent=47 // loop_footer_branch
                %225 = sbr.rel target = $region50
              $region55: #{tpu_custom_call.1} parent=47 // loop_exit
                _
            $region48: #{tpu_custom_call.1} parent=39 // pred_fallthru
              _
          $region40: #{tpu_custom_call.1} parent=35 // pred_fallthru
            _
          %269 = vnop
        $region36: #{tpu_custom_call.1} parent=31 // pred_fallthru
          _
        // Predicated region
        $region71: #{tpu_custom_call.1} parent=31 // pred_check
          %p270 = pneg %p145
        $region72: #{tpu_custom_call.1} parent=31 // pred_check_branch
          %272 = sbr.rel (%p270) target = $region74
        $region73: #{tpu_custom_call.1} parent=31 // pred_region
          %p273 = scmp.lt.s32.totalorder %s15, 1
          %s274 = scalar_select %p273, %s15, 1
          %s275 = scalar_lea.vmem %s5, %s274
        $region74: #{tpu_custom_call.1} parent=31 // pred_fallthru
          _
      $region32: #{tpu_custom_call.1} parent=5 // pred_fallthru
        _
      %p276 = scmp.le.s32.totalorder 1, %s15
      %p277 = scmp.lt.s32.totalorder %s15, 3
      %p278 = pnand %p276, %p277
      %p279 = pneg %p278
      // Predicated region
      $region75: #{tpu_custom_call.1} parent=5 // pred_check
        _
      $region76: #{tpu_custom_call.1} parent=5 // pred_check_branch
        %281 = sbr.rel (%p278) target = $region78
      $region77: #{tpu_custom_call.1} parent=5 // pred_region
        %s282 = ssub.s32 %s15, 1
        %s283 = sand.u32 %s28, 1
        %s284 = sand.u32 %s28, 1
        %s285 = smul.addr %s284, 48
        %s286 = scalar_lea.vmem [#allocation2], %s285
        // Predicated region
        $region79: #{tpu_custom_call.1} parent=77 // pred_check
          %p287 = pneg %p41
        $region80: #{tpu_custom_call.1} parent=77 // pred_check_branch
          %289 = sbr.rel (%p287) target = $region82
        $region81: #{tpu_custom_call.1} parent=77 // pred_region
          _
        $region82: #{tpu_custom_call.1} parent=77 // pred_fallthru
          _
        %s290 = sand.u32 %s28, 1
        %s291 = sand.u32 %s28, 1
        %s292 = smul.addr %s291, 48
        %s293 = scalar_lea.vmem [#allocation2], %s292
        %p294 = pneg %p41
        %p295 = pneg %p38
        %p296 = pneg %p62
        %p297 = pneg %p59
        %p298 = pneg %p83
        %p299 = pneg %p80
        %p300 = pneg %p104
        %p301 = pneg %p101
        %p302 = pneg %p125
        %p303 = pneg %p122
        %p304 = scmp.lt.s32.totalorder %s20, 1
        %s305 = scalar_select %p304, %s20, 1
        %s306 = scalar_lea.vmem %s5, %s305
        %p307 = pneg %p151
        %p308 = pneg %p148
        %p309 = pneg %p177
        %p310 = pneg %p174
        %s311 = sand.u32 %s164, 1
        %s312 = scalar_lea.sflag [#allocation4], %s311
        %s313 = sand.u32 %s164, 1
        %s314 = scalar_lea.vmem [#allocation3], %s313
        %p315 = scmp.lt.s32.totalorder %s20, 1
        %s316 = scalar_select %p315, %s20, 1
        %s317 = scalar_lea.vmem %s5, %s316
        %v318 = vld [vmem:[%s286] sm:$0xff]
        %v319 = vld [vmem:[%s286 + $0x8] sm:$0xff]
        %v320 = vld [vmem:[%s286 + $0x18] sm:$0xff]
        %v321 = vld [vmem:[%s286 + $0x20] sm:$0xff]
        %v322 = vld [vmem:[%s286 + $0x1] sm:$0xff]
        %v323 = vld [vmem:[%s286 + $0x9] sm:$0xff]
        %v324 = vld [vmem:[%s286 + $0x19] sm:$0xff]
        %v325 = vld [vmem:[%s286 + $0x21] sm:$0xff]
        %v326 = vld [vmem:[%s1] sm:$0xff]
        %v327 = vld [vmem:[%s1 + $0x8] sm:$0xff]
        %v328 = vld [vmem:[%s1 + $0x10] sm:$0xff]
        %v329 = vld [vmem:[%s1 + $0x18] sm:$0xff]
        %v330 = vld [vmem:[%s2] sm:$0xff]
        %v331 = vld [vmem:[%s2 + $0x8] sm:$0xff]
        %v332 = vld [vmem:[%s2 + $0x10] sm:$0xff]
        %v333 = vld [vmem:[%s2 + $0x18] sm:$0xff]
        %vm334 = vcmask 261120
        %v336 = vsel %vm334, %v322, 0
        %v339 = vsel %vm334, %v323, 0
        %v342 = vsel %vm334, %v324, 0
        %v345 = vsel %vm334, %v325, 0
        %347 = vmatprep.subr.mxu0 0.0
        %348 = vmatpush1.msra.mxu0 %v330
        %349 = vmatprep.subr.mxu0 0.0
        %350 = vmatpush1.msra.mxu0 %v331
        %351 = vmatprep.subr.mxu0 0.0
        %352 = vmatpush1.msra.mxu0 %v332
        %353 = vmatprep.subr.mxu0 0.0
        %354 = vmatpush1.msra.mxu0 %v333
        %355 = vmatprep.subr.mxu0 0.0
        %356 = vmatpush1.msra.mxu0 0.0
        %357 = vmatprep.subr.mxu0 0.0
        %358 = vmatpush1.msra.mxu0 0.0
        %359 = vmatprep.subr.mxu0 0.0
        %360 = vmatpush1.msra.mxu0 0.0
        %361 = vmatprep.subr.mxu0 0.0
        %362 = vmatpush1.msra.mxu0 0.0
        %363 = vmatprep.subr.mxu0 0.0
        %364 = vmatpush1.msra.mxu0 0.0
        %365 = vmatprep.subr.mxu0 0.0
        %366 = vmatpush1.msra.mxu0 0.0
        %367 = vmatprep.subr.mxu0 0.0
        %368 = vmatpush1.msra.mxu0 0.0
        %369 = vmatprep.subr.mxu0 0.0
        %370 = vmatpush1.msra.mxu0 0.0
        %371 = vmatprep.subr.mxu0 0.0
        %372 = vmatpush1.msra.mxu0 0.0
        %373 = vmatprep.subr.mxu0 0.0
        %374 = vmatpush1.msra.mxu0 0.0
        %375 = vmatprep.subr.mxu0 0.0
        %376 = vmatpush1.msra.mxu0 0.0
        %377 = vmatprep.subr.mxu0 0.0
        %378 = vmatpush1.msra.mxu0 0.0
        %379 = vmatprep.subr.mxu0 0.0
        %380 = vmatpush1.msra.mxu0 0.0
        %381 = vmatprep.subr.mxu0 0.0
        %382 = vmatpush1.msra.mxu0 0.0
        %383 = vmatprep.subr.mxu0 0.0
        %384 = vmatpush1.msra.mxu0 0.0
        %385 = vmatprep.subr.mxu0 0.0
        %386 = vmatpush1.msra.mxu0 0.0
        %387 = vmatprep.subr.mxu0 0.0
        %388 = vmatpush1.msra.mxu0 0.0
        %389 = vmatprep.subr.mxu0 0.0
        %390 = vmatpush1.msra.mxu0 0.0
        %391 = vmatprep.subr.mxu0 0.0
        %392 = vmatpush1.msra.mxu0 0.0
        %393 = vmatprep.subr.mxu0 0.0
        %394 = vmatpush1.msra.mxu0 0.0
        %395 = vmatprep.subr.mxu0 0.0
        %396 = vmatpush1.msra.mxu0 0.0
        %397 = vmatprep.subr.mxu0 0.0
        %398 = vmatpush1.msra.mxu0 0.0
        %399 = vmatprep.subr.mxu0 0.0
        %400 = vmatpush1.msra.mxu0 0.0
        %401 = vmatprep.subr.mxu0 0.0
        %402 = vmatpush1.msra.mxu0 0.0
        %403 = vmatprep.subr.mxu0 0.0
        %404 = vmatpush1.msra.mxu0 0.0
        %405 = vmatprep.subr.mxu0 0.0
        %406 = vmatpush1.msra.mxu0 0.0
        %407 = vmatprep.subr.mxu0 0.0
        %408 = vmatpush1.msra.mxu0 0.0
        %409 = vmatprep.subr.mxu0 0.0
        %410 = vmatpush1.msra.mxu0 0.0
        %411 = vmatprep.mubr.f32.mxu0 0.0
        %412 = vmatmul.mubr.f32.gmra.mrb[0].mxu0 %v336
        %v413 = vpop.f32.mrb[0].mxu0
        %v414 = vadd.f32 0.0, %v413
        %v415 = vpop.f32.mrb[0].mxu0
        %416 = vmatprep.mubr.f32.mxu0 0.0
        %417 = vmatmul.mubr.f32.gmra.mrb[0].mxu0 %v339
        %v418 = vpop.f32.mrb[0].mxu0
        %v419 = vadd.f32 0.0, %v418
        %v420 = vpop.f32.mrb[0].mxu0
        %421 = vmatprep.mubr.f32.mxu0 0.0
        %422 = vmatmul.mubr.f32.gmra.mrb[0].mxu0 %v342
        %v423 = vpop.f32.mrb[0].mxu0
        %v424 = vadd.f32 0.0, %v423
        %v425 = vpop.f32.mrb[0].mxu0
        %426 = vmatprep.mubr.f32.mxu0 0.0
        %427 = vmatmul.mubr.f32.gmra.mrb[0].mxu0 %v345
        %v428 = vpop.f32.mrb[0].mxu0
        %v429 = vadd.f32 0.0, %v428
        %v430 = vpop.f32.mrb[0].mxu0
        %431 = vdwg.mxu0
        %v433 = vsel %vm334, %v318, 0
        %v436 = vsel %vm334, %v319, 0
        %v439 = vsel %vm334, %v320, 0
        %v442 = vsel %vm334, %v321, 0
        %444 = vmatprep.subr.mxu0 0.0
        %445 = vmatpush1.msra.mxu0 %v326
        %446 = vmatprep.subr.mxu0 0.0
        %447 = vmatpush1.msra.mxu0 %v327
        %448 = vmatprep.subr.mxu0 0.0
        %449 = vmatpush1.msra.mxu0 %v328
        %450 = vmatprep.subr.mxu0 0.0
        %451 = vmatpush1.msra.mxu0 %v329
        %452 = vmatprep.subr.mxu0 0.0
        %453 = vmatpush1.msra.mxu0 0.0
        %454 = vmatprep.subr.mxu0 0.0
        %455 = vmatpush1.msra.mxu0 0.0
        %456 = vmatprep.subr.mxu0 0.0
        %457 = vmatpush1.msra.mxu0 0.0
        %458 = vmatprep.subr.mxu0 0.0
        %459 = vmatpush1.msra.mxu0 0.0
        %460 = vmatprep.subr.mxu0 0.0
        %461 = vmatpush1.msra.mxu0 0.0
        %462 = vmatprep.subr.mxu0 0.0
        %463 = vmatpush1.msra.mxu0 0.0
        %464 = vmatprep.subr.mxu0 0.0
        %465 = vmatpush1.msra.mxu0 0.0
        %466 = vmatprep.subr.mxu0 0.0
        %467 = vmatpush1.msra.mxu0 0.0
        %468 = vmatprep.subr.mxu0 0.0
        %469 = vmatpush1.msra.mxu0 0.0
        %470 = vmatprep.subr.mxu0 0.0
        %471 = vmatpush1.msra.mxu0 0.0
        %472 = vmatprep.subr.mxu0 0.0
        %473 = vmatpush1.msra.mxu0 0.0
        %474 = vmatprep.subr.mxu0 0.0
        %475 = vmatpush1.msra.mxu0 0.0
        %476 = vmatprep.subr.mxu0 0.0
        %477 = vmatpush1.msra.mxu0 0.0
        %478 = vmatprep.subr.mxu0 0.0
        %479 = vmatpush1.msra.mxu0 0.0
        %480 = vmatprep.subr.mxu0 0.0
        %481 = vmatpush1.msra.mxu0 0.0
        %482 = vmatprep.subr.mxu0 0.0
        %483 = vmatpush1.msra.mxu0 0.0
        %484 = vmatprep.subr.mxu0 0.0
        %485 = vmatpush1.msra.mxu0 0.0
        %486 = vmatprep.subr.mxu0 0.0
        %487 = vmatpush1.msra.mxu0 0.0
        %488 = vmatprep.subr.mxu0 0.0
        %489 = vmatpush1.msra.mxu0 0.0
        %490 = vmatprep.subr.mxu0 0.0
        %491 = vmatpush1.msra.mxu0 0.0
        %492 = vmatprep.subr.mxu0 0.0
        %493 = vmatpush1.msra.mxu0 0.0
        %494 = vmatprep.subr.mxu0 0.0
        %495 = vmatpush1.msra.mxu0 0.0
        %496 = vmatprep.subr.mxu0 0.0
        %497 = vmatpush1.msra.mxu0 0.0
        %498 = vmatprep.subr.mxu0 0.0
        %499 = vmatpush1.msra.mxu0 0.0
        %500 = vmatprep.subr.mxu0 0.0
        %501 = vmatpush1.msra.mxu0 0.0
        %502 = vmatprep.subr.mxu0 0.0
        %503 = vmatpush1.msra.mxu0 0.0
        %504 = vmatprep.subr.mxu0 0.0
        %505 = vmatpush1.msra.mxu0 0.0
        %506 = vmatprep.subr.mxu0 0.0
        %507 = vmatpush1.msra.mxu0 0.0
        %508 = vmatprep.mubr.f32.mxu0 0.0
        %509 = vmatmul.mubr.f32.gmra.mrb[0].mxu0 %v433
        %v510 = vpop.f32.mrb[0].mxu0
        %v511 = vadd.f32 %v414, %v510
        %v512 = vpop.f32.mrb[0].mxu0
        %513 = vmatprep.mubr.f32.mxu0 0.0
        %514 = vmatmul.mubr.f32.gmra.mrb[0].mxu0 %v436
        %v515 = vpop.f32.mrb[0].mxu0
        %v516 = vadd.f32 %v419, %v515
        %v517 = vpop.f32.mrb[0].mxu0
        %518 = vmatprep.mubr.f32.mxu0 0.0
        %519 = vmatmul.mubr.f32.gmra.mrb[0].mxu0 %v439
        %v520 = vpop.f32.mrb[0].mxu0
        %v521 = vadd.f32 %v424, %v520
        %v522 = vpop.f32.mrb[0].mxu0
        %523 = vmatprep.mubr.f32.mxu0 0.0
        %524 = vmatmul.mubr.f32.gmra.mrb[0].mxu0 %v442
        %v525 = vpop.f32.mrb[0].mxu0
        %v526 = vadd.f32 %v429, %v525
        %v527 = vpop.f32.mrb[0].mxu0
        %528 = vdwg.mxu0
        %v529 = vmul.f32 %v511, %v511
        %v530 = vmul.f32 %v516, %v516
        %v531 = vmul.f32 %v521, %v521
        %v532 = vmul.f32 %v526, %v526
        %v533 = vld [vmem:[%s3] sm:$0xff]
        %v534 = vld [vmem:[%s3 + $0x8] sm:$0xff]
        %v535 = vld [vmem:[%s3 + $0x10] sm:$0xff]
        %v536 = vld [vmem:[%s3 + $0x18] sm:$0xff]
        %v537 = vld [vmem:[%s3 + $0x20] sm:$0xff]
        %v538 = vld [vmem:[%s3 + $0x28] sm:$0xff]
        %v539 = vld [vmem:[%s3 + $0x30] sm:$0xff]
        %v540 = vld [vmem:[%s3 + $0x38] sm:$0xff]
        %v541 = vld [vmem:[%s3 + $0x40] sm:$0xff]
        %v542 = vld [vmem:[%s3 + $0x48] sm:$0xff]
        %v543 = vld [vmem:[%s3 + $0x50] sm:$0xff]
        %v544 = vld [vmem:[%s3 + $0x58] sm:$0xff]
        %v545 = vld [vmem:[%s3 + $0x60] sm:$0xff]
        %v546 = vld [vmem:[%s3 + $0x68] sm:$0xff]
        %v547 = vld [vmem:[%s3 + $0x70] sm:$0xff]
        %v548 = vld [vmem:[%s3 + $0x78] sm:$0xff]
        %549 = vmatprep.subr.mxu0 0.0
        %550 = vmatpush1.msra.mxu0 %v533
        %551 = vmatprep.subr.mxu0 0.0
        %552 = vmatpush1.msra.mxu0 %v534
        %553 = vmatprep.subr.mxu0 0.0
        %554 = vmatpush1.msra.mxu0 %v535
        %555 = vmatprep.subr.mxu0 0.0
        %556 = vmatpush1.msra.mxu0 %v536
        %557 = vmatprep.subr.mxu0 0.0
        %558 = vmatpush1.msra.mxu0 %v537
        %559 = vmatprep.subr.mxu0 0.0
        %560 = vmatpush1.msra.mxu0 %v538
        %561 = vmatprep.subr.mxu0 0.0
        %562 = vmatpush1.msra.mxu0 %v539
        %563 = vmatprep.subr.mxu0 0.0
        %564 = vmatpush1.msra.mxu0 %v540
        %565 = vmatprep.subr.mxu0 0.0
        %566 = vmatpush1.msra.mxu0 %v541
        %567 = vmatprep.subr.mxu0 0.0
        %568 = vmatpush1.msra.mxu0 %v542
        %569 = vmatprep.subr.mxu0 0.0
        %570 = vmatpush1.msra.mxu0 %v543
        %571 = vmatprep.subr.mxu0 0.0
        %572 = vmatpush1.msra.mxu0 %v544
        %573 = vmatprep.subr.mxu0 0.0
        %574 = vmatpush1.msra.mxu0 %v545
        %575 = vmatprep.subr.mxu0 0.0
        %576 = vmatpush1.msra.mxu0 %v546
        %577 = vmatprep.subr.mxu0 0.0
        %578 = vmatpush1.msra.mxu0 %v547
        %579 = vmatprep.subr.mxu0 0.0
        %580 = vmatpush1.msra.mxu0 %v548
        %581 = vmatprep.subr.mxu0 0.0
        %582 = vmatpush1.msra.mxu0 0.0
        %583 = vmatprep.subr.mxu0 0.0
        %584 = vmatpush1.msra.mxu0 0.0
        %585 = vmatprep.subr.mxu0 0.0
        %586 = vmatpush1.msra.mxu0 0.0
        %587 = vmatprep.subr.mxu0 0.0
        %588 = vmatpush1.msra.mxu0 0.0
        %589 = vmatprep.subr.mxu0 0.0
        %590 = vmatpush1.msra.mxu0 0.0
        %591 = vmatprep.subr.mxu0 0.0
        %592 = vmatpush1.msra.mxu0 0.0
        %593 = vmatprep.subr.mxu0 0.0
        %594 = vmatpush1.msra.mxu0 0.0
        %595 = vmatprep.subr.mxu0 0.0
        %596 = vmatpush1.msra.mxu0 0.0
        %597 = vmatprep.subr.mxu0 0.0
        %598 = vmatpush1.msra.mxu0 0.0
        %599 = vmatprep.subr.mxu0 0.0
        %600 = vmatpush1.msra.mxu0 0.0
        %601 = vmatprep.subr.mxu0 0.0
        %602 = vmatpush1.msra.mxu0 0.0
        %603 = vmatprep.subr.mxu0 0.0
        %604 = vmatpush1.msra.mxu0 0.0
        %605 = vmatprep.subr.mxu0 0.0
        %606 = vmatpush1.msra.mxu0 0.0
        %607 = vmatprep.subr.mxu0 0.0
        %608 = vmatpush1.msra.mxu0 0.0
        %609 = vmatprep.subr.mxu0 0.0
        %610 = vmatpush1.msra.mxu0 0.0
        %611 = vmatprep.subr.mxu0 0.0
        %612 = vmatpush1.msra.mxu0 0.0
        %613 = vmatprep.mubr.f32.mxu0 0.0
        %614 = vmatmul.mubr.f32.gmra.mrb[0].mxu0 %v529
        %v615 = vpop.f32.mrb[0].mxu0
        %v616 = vadd.f32 1e-06, %v615
        %v617 = vpop.f32.mrb[0].mxu0
        %618 = vmatprep.mubr.f32.mxu0 0.0
        %619 = vmatmul.mubr.f32.gmra.mrb[0].mxu0 %v530
        %v620 = vpop.f32.mrb[0].mxu0
        %v621 = vadd.f32 1e-06, %v620
        %v622 = vpop.f32.mrb[0].mxu0
        %623 = vmatprep.mubr.f32.mxu0 0.0
        %624 = vmatmul.mubr.f32.gmra.mrb[0].mxu0 %v531
        %v625 = vpop.f32.mrb[0].mxu0
        %v626 = vadd.f32 1e-06, %v625
        %v627 = vpop.f32.mrb[0].mxu0
        %628 = vmatprep.mubr.f32.mxu0 0.0
        %629 = vmatmul.mubr.f32.gmra.mrb[0].mxu0 %v532
        %v630 = vpop.f32.mrb[0].mxu0
        %v631 = vadd.f32 1e-06, %v630
        %v632 = vpop.f32.mrb[0].mxu0
        %633 = vdwg.mxu0
        %v634 = vlog2.pop %v616
        %v635 = vmul.f32 %v634, 0.6931472
        %v636 = vlog2.pop %v621
        %v637 = vmul.f32 %v636, 0.6931472
        %v638 = vlog2.pop %v626
        %v639 = vmul.f32 %v638, 0.6931472
        %v640 = vlog2.pop %v631
        %v641 = vmul.f32 %v640, 0.6931472
        %v642 = vld [vmem:[%s4] sm:$0xff]
        %v643 = vld [vmem:[%s4 + $0x8] sm:$0xff]
        %v644 = vld [vmem:[%s4 + $0x10] sm:$0xf]
        %vm645 = vcmask 162816
        %v647 = vsel %vm645, %v635, 0
        %v650 = vsel %vm645, %v637, 0
        %v653 = vsel %vm645, %v639, 0
        %v656 = vsel %vm645, %v641, 0
        %vm658 = vcmask 1043456
        %v660 = vsel %vm658, %v644, 0
        %662 = vmatprep.subr.mxu0 0.0
        %663 = vmatpush1.msra.mxu0 %v642
        %664 = vmatprep.subr.mxu0 0.0
        %665 = vmatpush1.msra.mxu0 %v643
        %666 = vmatprep.subr.mxu0 0.0
        %667 = vmatpush1.msra.mxu0 %v660
        %668 = vmatprep.subr.mxu0 0.0
        %669 = vmatpush1.msra.mxu0 0.0
        %670 = vmatprep.subr.mxu0 0.0
        %671 = vmatpush1.msra.mxu0 0.0
        %672 = vmatprep.subr.mxu0 0.0
        %673 = vmatpush1.msra.mxu0 0.0
        %674 = vmatprep.subr.mxu0 0.0
        %675 = vmatpush1.msra.mxu0 0.0
        %676 = vmatprep.subr.mxu0 0.0
        %677 = vmatpush1.msra.mxu0 0.0
        %678 = vmatprep.subr.mxu0 0.0
        %679 = vmatpush1.msra.mxu0 0.0
        %680 = vmatprep.subr.mxu0 0.0
        %681 = vmatpush1.msra.mxu0 0.0
        %682 = vmatprep.subr.mxu0 0.0
        %683 = vmatpush1.msra.mxu0 0.0
        %684 = vmatprep.subr.mxu0 0.0
        %685 = vmatpush1.msra.mxu0 0.0
        %686 = vmatprep.subr.mxu0 0.0
        %687 = vmatpush1.msra.mxu0 0.0
        %688 = vmatprep.subr.mxu0 0.0
        %689 = vmatpush1.msra.mxu0 0.0
        %690 = vmatprep.subr.mxu0 0.0
        %691 = vmatpush1.msra.mxu0 0.0
        %692 = vmatprep.subr.mxu0 0.0
        %693 = vmatpush1.msra.mxu0 0.0
        %694 = vmatprep.subr.mxu0 0.0
        %695 = vmatpush1.msra.mxu0 0.0
        %696 = vmatprep.subr.mxu0 0.0
        %697 = vmatpush1.msra.mxu0 0.0
        %698 = vmatprep.subr.mxu0 0.0
        %699 = vmatpush1.msra.mxu0 0.0
        %700 = vmatprep.subr.mxu0 0.0
        %701 = vmatpush1.msra.mxu0 0.0
        %702 = vmatprep.subr.mxu0 0.0
        %703 = vmatpush1.msra.mxu0 0.0
        %704 = vmatprep.subr.mxu0 0.0
        %705 = vmatpush1.msra.mxu0 0.0
        %706 = vmatprep.subr.mxu0 0.0
        %707 = vmatpush1.msra.mxu0 0.0
        %708 = vmatprep.subr.mxu0 0.0
        %709 = vmatpush1.msra.mxu0 0.0
        %710 = vmatprep.subr.mxu0 0.0
        %711 = vmatpush1.msra.mxu0 0.0
        %712 = vmatprep.subr.mxu0 0.0
        %713 = vmatpush1.msra.mxu0 0.0
        %714 = vmatprep.subr.mxu0 0.0
        %715 = vmatpush1.msra.mxu0 0.0
        %716 = vmatprep.subr.mxu0 0.0
        %717 = vmatpush1.msra.mxu0 0.0
        %718 = vmatprep.subr.mxu0 0.0
        %719 = vmatpush1.msra.mxu0 0.0
        %720 = vmatprep.subr.mxu0 0.0
        %721 = vmatpush1.msra.mxu0 0.0
        %722 = vmatprep.subr.mxu0 0.0
        %723 = vmatpush1.msra.mxu0 0.0
        %724 = vmatprep.subr.mxu0 0.0
        %725 = vmatpush1.msra.mxu0 0.0
        %726 = vmatprep.mubr.f32.mxu0 0.0
        %727 = vmatmul.mubr.f32.gmra.mrb[0].mxu0 %v647
        %v728 = vpop.f32.mrb[0].mxu0
        %v729 = vadd.f32 0.0, %v728
        %v730 = vpop.f32.mrb[0].mxu0
        %731 = vmatprep.mubr.f32.mxu0 0.0
        %732 = vmatmul.mubr.f32.gmra.mrb[0].mxu0 %v650
        %v733 = vpop.f32.mrb[0].mxu0
        %v734 = vadd.f32 0.0, %v733
        %v735 = vpop.f32.mrb[0].mxu0
        %736 = vmatprep.mubr.f32.mxu0 0.0
        %737 = vmatmul.mubr.f32.gmra.mrb[0].mxu0 %v653
        %v738 = vpop.f32.mrb[0].mxu0
        %v739 = vadd.f32 0.0, %v738
        %v740 = vpop.f32.mrb[0].mxu0
        %741 = vmatprep.mubr.f32.mxu0 0.0
        %742 = vmatmul.mubr.f32.gmra.mrb[0].mxu0 %v656
        %v743 = vpop.f32.mrb[0].mxu0
        %v744 = vadd.f32 0.0, %v743
        %v745 = vpop.f32.mrb[0].mxu0
        %746 = vdwg.mxu0
        %v747 = vsub.f32 %v729, %v739
        %v748 = vsub.f32 %v734, %v744
        %v749 = vand.u32 2147483647, %v747
        %v750 = vand.u32 2147483647, %v748
        %v751 = vlaneseq
        %v752 = vshrl.u32 %v751, 7
        %v753 = vadd.s32 %v752, 8
        %v754 = vcvt.s32.f32 %v752
        %v755 = vcvt.s32.f32 %v753
        %v756 = vld [vmem:[%s317] sm:$0x1]
        %v758 = vlaneseq
        %v759 = vshrl.u32 %v758, 7
        %v760 = vsub.s32 0, %v759
        %v761 = vrot.slane %v756, %v760
        %vm763 = vcmp.lt.f32.partialorder %v754, %v761
        %vm764 = vcmp.lt.f32.partialorder %v755, %v761
        %v765 = vsel %vm763, 1, 0
        %v766 = vsel %vm764, 1, 0
        %v767 = vcvt.s32.f32 %v765
        %v768 = vcvt.s32.f32 %v766
        %770 = vset.pattern.permute.xlu0 0
        %771 = vperm.xlu0 %770, %v767
        %v772 = vpop.permute.xlu0 %771
        %775 = vset.pattern.permute.xlu0 0
        %776 = vperm.xlu0 %775, %v768
        %v777 = vpop.permute.xlu0 %776
        %v779 = vmul.f32 %v749, %v772
        %v780 = vmul.f32 %v750, %v777
        %vm781 = vcmask 80896
        %v782 = vsel %vm781, %v779, 0.0
        %v783 = vsel %vm781, %v780, 0.0
        %v784 = vadd.f32 %v782, %v783
        %785 = vadd.xlane.f32.xlu0 %v784
        %v786 = vpop.xlane.xlu0 %785
        %v787 = vrot.slane %v786, 4
        %v788 = vadd.f32 %v786, %v787
        %v789 = vrot.slane %v788, 2
        %v790 = vadd.f32 %v788, %v789
        %v791 = vrot.slane %v790, 1
        %v792 = vadd.f32 %v790, %v791
        %s793 = vtos %v792
        %v794 = vstv %s793
        %795 = vst [vmem:[%s314] sm:$0x1] %v794
        %s796 = sand.u32 %s164, 1
        %s797 = scalar_lea.sflag [#allocation4], %s796
        %s798 = sand.u32 %s164, 1
        %s799 = scalar_lea.vmem [#allocation3], %s798
        // Predicated region
        $region83: #{tpu_custom_call.1} parent=77 // pred_check
          %p800 = pneg %p174
        $region84: #{tpu_custom_call.1} parent=77 // pred_check_branch
          %802 = sbr.rel (%p800) target = $region86
        $region85: #{tpu_custom_call.1} parent=77 // pred_region
          %s804 = ssub.s32 16, 16
          %805 = vsyncadd %s797, %s804
          %s806 = smul.addr %s20, 16
          %s807 = scalar_lea.hbm %s6, %s806
          %s809 = sshll.u32 %s799, 4
          %s810 = int_to_ptr.vmem [resolvable:$true] %s809
          %812 = dma.vmem_to_hbm [thread:$0]  %s810, 16, %s807, %s797
        $region86: #{tpu_custom_call.1} parent=77 // pred_fallthru
          _
      $region78: #{tpu_custom_call.1} parent=5 // pred_fallthru
        _
      %p813 = scmp.le.s32.totalorder 2, %s15
      // Predicated region
      $region87: #{tpu_custom_call.1} parent=5 // pred_check
        %p814 = pneg %p813
      $region88: #{tpu_custom_call.1} parent=5 // pred_check_branch
        %816 = sbr.rel (%p814) target = $region90
      $region89: #{tpu_custom_call.1} parent=5 // pred_region
        %s817 = ssub.s32 %s15, 2
        // Predicated region
        $region91: #{tpu_custom_call.1} parent=89 // pred_check
          %p818 = pneg %p180
        $region92: #{tpu_custom_call.1} parent=89 // pred_check_branch
          %820 = sbr.rel (%p818) target = $region94
        $region93: #{tpu_custom_call.1} parent=89 // pred_region
          %s821 = sand.u32 %s165, 1
          %s822 = scalar_lea.sflag [#allocation4], %s821
          %s823 = sand.u32 %s165, 1
          %s824 = scalar_lea.vmem [#allocation3], %s823
          %825 = dma.done %s822, 16
        $region94: #{tpu_custom_call.1} parent=89 // pred_fallthru
          _
      $region90: #{tpu_custom_call.1} parent=5 // pred_fallthru
        _
    $region6: #{tpu_custom_call.1} parent=1 // loop_footer
      %s19 = sadd.s32 1, %s15
    $region7: #{tpu_custom_call.1} parent=1 // loop_footer_branch
      %14 = sbr.rel target = $region3
    $region8: #{tpu_custom_call.1} parent=1 // loop_exit
      _
    %826 = vsyncpa [#allocation4], 1
    %s827 = scalar_lea.sflag [#allocation4], 1
    %828 = vsyncpa %s827, 1

</llo_original>
